<compile_context>
chip_gen: v7x
topology: tpu7x:2x2x1
jax: 0.10.0
libtpu: 0.0.40
codegen_flags: <defaults>
</compile_context>

<pallas_src>
import string

import jax
import jax.numpy as jnp
from jax.experimental import pallas as pl
from jax.experimental.pallas import tpu as pltpu


NEG_BIG = -1e30  # effectively -inf for padded logit lanes (avoids inf-inf NaN)


# ----------------------------- Pallas kernel --------------------------------
def rnn_fused_kernel(x_ref, h0_ref, wx_ref, whh_ref, who_ref, b_ref,
                     out_ref, hfin_ref,
                     zh_ref, zo_ref, hprev_ref):
    """Whole-sequence RNN forward in a single kernel invocation.

    x_ref    : (T, Bp, Ip)       one-hot inputs, compute dtype (f32 or bf16)
    h0_ref   : (Bp, H)  f32      initial hidden
    wx_ref   : (Ip, H+O_pad)     merged [i2h | i2o] weights for the x part
    whh_ref  : (H, H)            recurrent (hidden->hidden) weight
    who_ref  : (H, O_pad)        hidden->logits weight (zero-padded columns)
    b_ref    : (1, H+O_pad) f32  merged bias (padded logit lanes = -1e30)
    out_ref  : (T, Bp, O_pad) f32  per-timestep log-probs (padded lanes junk)
    hfin_ref : (Bp, H) f32       final hidden state
    zh_ref   : (T, Bp, H) f32        scratch: x-part of hidden update (+bias)
    zo_ref   : (T, Bp, O_pad) f32    scratch: x-part of logits       (+bias)
    hprev_ref: (T, Bp, H) f32        scratch: h_{t-1} history for phase 3
    """
    T, Bp, Ip = x_ref.shape
    H = whh_ref.shape[0]
    Opad = who_ref.shape[1]
    cdt = whh_ref.dtype  # matmul operand dtype (f32 or bf16)

    # ---- Phase 1: batched input projection (off the serial critical path) ---
    x_flat = x_ref[...].reshape(T * Bp, Ip)
    z = jnp.dot(x_flat, wx_ref[...], preferred_element_type=jnp.float32)
    z = z + b_ref[...]                                  # broadcast (1, H+Opad)
    zh_ref[...] = z[:, :H].reshape(T, Bp, H)            # lane-128 aligned split
    zo_ref[...] = z[:, H:].reshape(T, Bp, Opad)

    # ---- Phase 2: serial recurrence -- one HxH matmul per timestep ----------
    def step(t, h_prev):
        hprev_ref[t] = h_prev                            # record h_{t-1}
        h_new = zh_ref[t] + jnp.dot(h_prev.astype(cdt), whh_ref[...],
                                    preferred_element_type=jnp.float32)
        return h_new

    h_last = jax.lax.fori_loop(0, T, step, h0_ref[...], unroll=True)
    hfin_ref[...] = h_last

    # ---- Phase 3: batched output projection + log_softmax -------------------
    hprev_flat = hprev_ref[...].reshape(T * Bp, H).astype(cdt)
    logits = (zo_ref[...].reshape(T * Bp, Opad)
              + jnp.dot(hprev_flat, who_ref[...],
                        preferred_element_type=jnp.float32))
    # Padded logit lanes carry ~-1e30 from the bias -> exp() == 0 exactly.
    m = jnp.max(logits, axis=1, keepdims=True)
    shifted = logits - m
    lse = jnp.log(jnp.sum(jnp.exp(shifted), axis=1, keepdims=True))
    out_ref[...] = (shifted - lse).reshape(T, Bp, Opad).astype(out_ref.dtype)


# ------------------------ one-time parameter preparation ---------------------
def prepare_params(w_i2h, b_i2h, w_i2o, b_i2o, input_size, hidden_size,
                   *, i_pad=128, o_pad=128, compute_dtype=jnp.float32):
    """Transpose, split the concat dim, merge i2h/i2o, pad lanes, cast."""
    I, H = input_size, hidden_size
    O = w_i2o.shape[0]
    assert O <= o_pad and I <= i_pad

    wih_t = w_i2h.T                                      # (I+H, H)
    wio_t = jnp.pad(w_i2o.T, ((0, 0), (0, o_pad - O)))   # (I+H, O_pad) zero cols

    wx_h, wh_h = wih_t[:I], wih_t[I:]                    # (I, H), (H, H)
    wx_o, wh_o = wio_t[:I], wio_t[I:]                    # (I, O_pad), (H, O_pad)

    wx = jnp.concatenate([wx_h, wx_o], axis=1)           # (I, H + O_pad)
    wx = jnp.pad(wx, ((0, i_pad - I), (0, 0)))           # (Ip, H + O_pad)

    bias = jnp.concatenate(
        [b_i2h, jnp.pad(b_i2o, (0, o_pad - O), constant_values=NEG_BIG)]
    ).reshape(1, H + o_pad).astype(jnp.float32)          # bias stays f32

    return (wx.astype(compute_dtype), wh_h.astype(compute_dtype),
            wh_o.astype(compute_dtype), bias)


# ------------------------------ wrapper --------------------------------------
def rnn_sequence(x_seq, h0, wx, whh, who, bias, *, output_size,
                 compute_dtype=jnp.float32):
    """Run the RNN over a full sequence in one fused pallas_call.

    x_seq: (T, B, I) f32; h0: (B, H) f32.
    Returns (log_probs (T, B, O), final_hidden (B, H)), both f32.
    """
    T, B, I = x_seq.shape
    Ip, HO = wx.shape
    H = whh.shape[0]
    Opad = who.shape[1]

    # Sublane tile: 8 for f32 operands, 16 for bf16-packed operands.
    tile = 16 if compute_dtype == jnp.bfloat16 else 8
    Bp = ((B + tile - 1) // tile) * tile

    x = x_seq
    if Bp != B:
        x = jnp.pad(x, ((0, 0), (0, Bp - B), (0, 0)))
    if Ip != I:
        x = jnp.pad(x, ((0, 0), (0, 0), (0, Ip - I)))
    x = x.astype(compute_dtype)

    h0p = jnp.pad(h0, ((0, Bp - B), (0, 0))) if Bp != B else h0
    h0p = h0p.astype(jnp.float32)

    vmem = pl.BlockSpec(memory_space=pltpu.MemorySpace.VMEM)

    out_log, h_fin = pl.pallas_call(
        rnn_fused_kernel,
        out_shape=(
            jax.ShapeDtypeStruct((T, Bp, Opad), jnp.float32),
            jax.ShapeDtypeStruct((Bp, H), jnp.float32),
        ),
        in_specs=[vmem, vmem, vmem, vmem, vmem, vmem],
        out_specs=(vmem, vmem),
        scratch_shapes=[
            pltpu.VMEM((T, Bp, H), jnp.float32),      # zh
            pltpu.VMEM((T, Bp, Opad), jnp.float32),   # zo
            pltpu.VMEM((T, Bp, H), jnp.float32),      # h_{t-1} history
        ],
    )(x, h0p, wx, whh, who, bias)

    return out_log[:, :B, :output_size], h_fin[:B]


# --------------------------- parameter / input setup -------------------------
all_letters = string.ascii_letters + " .,;'"
n_letters = len(all_letters)   # 57
n_hidden = 128
n_categories = 18              # classic name-classification tutorial


def letter_to_index(letter):
    return all_letters.find(letter)


def line_to_tensor(line):
    t = jnp.zeros((len(line), 1, n_letters), dtype=jnp.float32)
    for li, letter in enumerate(line):
        t = t.at[li, 0, letter_to_index(letter)].set(1.0)
    return t


def init_linear(key, in_features, out_features):
    # Mimic nn.Linear default init: U(-1/sqrt(fan_in), 1/sqrt(fan_in))
    kw, kb = jax.random.split(key)
    bound = 1.0 / (in_features ** 0.5)
    w = jax.random.uniform(kw, (out_features, in_features),
                           jnp.float32, -bound, bound)
    b = jax.random.uniform(kb, (out_features,), jnp.float32, -bound, bound)
    return w, b


def reference_forward(x_seq, h0, w_i2h, b_i2h, w_i2o, b_i2o, cast=None):
    """Pure-JAX per-step reference (matches the PyTorch forward).

    If `cast` is a dtype, matmul operands (x, h, weights) are rounded through
    it before f32 math -- matching the kernel's bf16-operand / f32-accumulate
    path for an apples-to-apples comparison.
    """
    def maybe(v):
        return v.astype(cast).astype(jnp.float32) if cast is not None else v

    wih, wio = maybe(w_i2h), maybe(w_i2o)
    h = h0
    outs = []
    for t in range(x_seq.shape[0]):
        combined = jnp.concatenate([maybe(x_seq[t]), maybe(h)], axis=1)
        h = combined @ wih.T + b_i2h
        logits = combined @ wio.T + b_i2o
        outs.append(jax.nn.log_softmax(logits, axis=1))
    return jnp.stack(outs, axis=0), h


if __name__ == "__main__":
    key = jax.random.PRNGKey(0)
    k1, k2 = jax.random.split(key)

    input_size = n_letters
    hidden_size = n_hidden
    output_size = n_categories

    w_i2h, b_i2h = init_linear(k1, input_size + hidden_size, hidden_size)
    w_i2o, b_i2o = init_linear(k2, input_size + hidden_size, output_size)

    # Whole sequence 'Albert' (T=6, B=1).
    x_seq = line_to_tensor("Albert")                 # (6, 1, 57)
    hidden0 = jnp.zeros((1, n_hidden), jnp.float32)

    # ---------------- f32 run (tight correctness check) ----------------------
    wx, whh, who, bias = prepare_params(
        w_i2h, b_i2h, w_i2o, b_i2o, input_size, hidden_size,
        compute_dtype=jnp.float32)
    out_f32, hfin_f32 = rnn_sequence(
        x_seq, hidden0, wx, whh, who, bias,
        output_size=output_size, compute_dtype=jnp.float32)
    jax.block_until_ready((out_f32, hfin_f32))

    ref_out, ref_h = reference_forward(x_seq, hidden0,
                                       w_i2h, b_i2h, w_i2o, b_i2o)
    assert jnp.allclose(out_f32, ref_out, atol=1e-4), \
        float(jnp.max(jnp.abs(out_f32 - ref_out)))
    assert jnp.allclose(hfin_f32, ref_h, atol=1e-4), \
        float(jnp.max(jnp.abs(hfin_f32 - ref_h)))

    # -------- bf16-operand run (native MXU dtype on v5e/v6e/v7x) -------------
    wxb, whhb, whob, biasb = prepare_params(
        w_i2h, b_i2h, w_i2o, b_i2o, input_size, hidden_size,
        compute_dtype=jnp.bfloat16)
    out_bf, hfin_bf = rnn_sequence(
        x_seq, hidden0, wxb, whhb, whob, biasb,
        output_size=output_size, compute_dtype=jnp.bfloat16)
    jax.block_until_ready((out_bf, hfin_bf))

    ref_out_bf, ref_h_bf = reference_forward(x_seq, hidden0,
                                             w_i2h, b_i2h, w_i2o, b_i2o,
                                             cast=jnp.bfloat16)
    assert jnp.allclose(out_bf, ref_out_bf, atol=5e-3), \
        float(jnp.max(jnp.abs(out_bf - ref_out_bf)))
    assert jnp.allclose(hfin_bf, ref_h_bf, atol=5e-3), \
        float(jnp.max(jnp.abs(hfin_bf - ref_h_bf)))

    print("KERNEL_OK")
</pallas_src>

<mosaic_0001>
module attributes {stable_mosaic.version = 11 : i64} {
  func.func @rnn_fused_kernel(%arg0: memref<6x8x128xf32, #tpu.memory_space<vmem>>, %arg1: memref<8x128xf32, #tpu.memory_space<vmem>>, %arg2: memref<128x256xf32, #tpu.memory_space<vmem>>, %arg3: memref<128x128xf32, #tpu.memory_space<vmem>>, %arg4: memref<128x128xf32, #tpu.memory_space<vmem>>, %arg5: memref<1x256xf32, #tpu.memory_space<vmem>>, %arg6: memref<6x8x128xf32, #tpu.memory_space<vmem>>, %arg7: memref<8x128xf32, #tpu.memory_space<vmem>>, %arg8: memref<6x8x128xf32, #tpu.memory_space<vmem>>, %arg9: memref<6x8x128xf32, #tpu.memory_space<vmem>>, %arg10: memref<6x8x128xf32, #tpu.memory_space<vmem>>) attributes {dimension_semantics = [], scalar_prefetch = 0 : i64, scratch_operands = 3 : i64, tpu.core_type = #tpu.core_type<tc>} {
    %c0 = arith.constant 0 : index
    %c0_0 = arith.constant 0 : index
    %c0_1 = arith.constant 0 : index
    %0 = vector.load %arg0[%c0, %c0_0, %c0_1] : memref<6x8x128xf32, #tpu.memory_space<vmem>>, vector<6x8x128xf32>
    %1 = vector.shape_cast %0 : vector<6x8x128xf32> to vector<48x128xf32>
    %c0_2 = arith.constant 0 : index
    %c0_3 = arith.constant 0 : index
    %2 = vector.load %arg2[%c0_2, %c0_3] : memref<128x256xf32, #tpu.memory_space<vmem>>, vector<128x256xf32>
    %cst = arith.constant dense<0.000000e+00> : vector<48x256xf32>
    %3 = tpu.matmul %1, %2, %cst {dimension_numbers = #tpu.dot_dimension_numbers<[1], [0], [0], [1], [0, 0, 1, 1], [], []>} : vector<48x128xf32>, vector<128x256xf32>, vector<48x256xf32> -> vector<48x256xf32>
    %c0_4 = arith.constant 0 : index
    %c0_5 = arith.constant 0 : index
    %4 = vector.load %arg5[%c0_4, %c0_5] : memref<1x256xf32, #tpu.memory_space<vmem>>, vector<1x256xf32>
    %5 = vector.broadcast %4 : vector<1x256xf32> to vector<48x256xf32>
    %6 = arith.addf %3, %5 : vector<48x256xf32>
    %7 = vector.extract_strided_slice %6 {offsets = [0, 0], sizes = [48, 128], strides = [1, 1]} : vector<48x256xf32> to vector<48x128xf32>
    %8 = vector.shape_cast %7 : vector<48x128xf32> to vector<6x8x128xf32>
    %c0_6 = arith.constant 0 : index
    %c0_7 = arith.constant 0 : index
    %c0_8 = arith.constant 0 : index
    %9 = vector.load %arg8[%c0_6, %c0_7, %c0_8] : memref<6x8x128xf32, #tpu.memory_space<vmem>>, vector<6x8x128xf32>
    tpu.vector_store %arg8[%c0_6, %c0_7, %c0_8], %8 {strides = array<i32>} : memref<6x8x128xf32, #tpu.memory_space<vmem>>, vector<6x8x128xf32>,
    %10 = vector.extract_strided_slice %6 {offsets = [0, 128], sizes = [48, 128], strides = [1, 1]} : vector<48x256xf32> to vector<48x128xf32>
    %11 = vector.shape_cast %10 : vector<48x128xf32> to vector<6x8x128xf32>
    %c0_9 = arith.constant 0 : index
    %c0_10 = arith.constant 0 : index
    %c0_11 = arith.constant 0 : index
    %12 = vector.load %arg9[%c0_9, %c0_10, %c0_11] : memref<6x8x128xf32, #tpu.memory_space<vmem>>, vector<6x8x128xf32>
    tpu.vector_store %arg9[%c0_9, %c0_10, %c0_11], %11 {strides = array<i32>} : memref<6x8x128xf32, #tpu.memory_space<vmem>>, vector<6x8x128xf32>,
    %c0_12 = arith.constant 0 : index
    %c0_13 = arith.constant 0 : index
    %13 = vector.load %arg1[%c0_12, %c0_13] : memref<8x128xf32, #tpu.memory_space<vmem>>, vector<8x128xf32>
    %c0_i32 = arith.constant 0 : i32
    %14 = arith.index_cast %c0_i32 : i32 to index
    %c0_14 = arith.constant 0 : index
    %c0_15 = arith.constant 0 : index
    %15 = vector.load %arg10[%14, %c0_14, %c0_15] : memref<6x8x128xf32, #tpu.memory_space<vmem>>, vector<1x8x128xf32>
    %16 = vector.shape_cast %15 : vector<1x8x128xf32> to vector<8x128xf32>
    %17 = vector.shape_cast %13 : vector<8x128xf32> to vector<1x8x128xf32>
    tpu.vector_store %arg10[%14, %c0_14, %c0_15], %17 {strides = array<i32>} : memref<6x8x128xf32, #tpu.memory_space<vmem>>, vector<1x8x128xf32>,
    %18 = arith.index_cast %c0_i32 : i32 to index
    %c0_16 = arith.constant 0 : index
    %c0_17 = arith.constant 0 : index
    %19 = vector.load %arg8[%18, %c0_16, %c0_17] : memref<6x8x128xf32, #tpu.memory_space<vmem>>, vector<1x8x128xf32>
    %20 = vector.shape_cast %19 : vector<1x8x128xf32> to vector<8x128xf32>
    %c0_18 = arith.constant 0 : index
    %c0_19 = arith.constant 0 : index
    %21 = vector.load %arg3[%c0_18, %c0_19] : memref<128x128xf32, #tpu.memory_space<vmem>>, vector<128x128xf32>
    %cst_20 = arith.constant dense<0.000000e+00> : vector<8x128xf32>
    %22 = tpu.matmul %13, %21, %cst_20 {dimension_numbers = #tpu.dot_dimension_numbers<[1], [0], [0], [1], [0, 0, 1, 1], [], []>} : vector<8x128xf32>, vector<128x128xf32>, vector<8x128xf32> -> vector<8x128xf32>
    %23 = arith.addf %20, %22 : vector<8x128xf32>
    %c1_i32 = arith.constant 1 : i32
    %24 = arith.index_cast %c1_i32 : i32 to index
    %c0_21 = arith.constant 0 : index
    %c0_22 = arith.constant 0 : index
    %25 = vector.load %arg10[%24, %c0_21, %c0_22] : memref<6x8x128xf32, #tpu.memory_space<vmem>>, vector<1x8x128xf32>
    %26 = vector.shape_cast %25 : vector<1x8x128xf32> to vector<8x128xf32>
    %27 = vector.shape_cast %23 : vector<8x128xf32> to vector<1x8x128xf32>
    tpu.vector_store %arg10[%24, %c0_21, %c0_22], %27 {strides = array<i32>} : memref<6x8x128xf32, #tpu.memory_space<vmem>>, vector<1x8x128xf32>,
    %28 = arith.index_cast %c1_i32 : i32 to index
    %c0_23 = arith.constant 0 : index
    %c0_24 = arith.constant 0 : index
    %29 = vector.load %arg8[%28, %c0_23, %c0_24] : memref<6x8x128xf32, #tpu.memory_space<vmem>>, vector<1x8x128xf32>
    %30 = vector.shape_cast %29 : vector<1x8x128xf32> to vector<8x128xf32>
    %c0_25 = arith.constant 0 : index
    %c0_26 = arith.constant 0 : index
    %31 = vector.load %arg3[%c0_25, %c0_26] : memref<128x128xf32, #tpu.memory_space<vmem>>, vector<128x128xf32>
    %cst_27 = arith.constant dense<0.000000e+00> : vector<8x128xf32>
    %32 = tpu.matmul %23, %31, %cst_27 {dimension_numbers = #tpu.dot_dimension_numbers<[1], [0], [0], [1], [0, 0, 1, 1], [], []>} : vector<8x128xf32>, vector<128x128xf32>, vector<8x128xf32> -> vector<8x128xf32>
    %33 = arith.addf %30, %32 : vector<8x128xf32>
    %c2_i32 = arith.constant 2 : i32
    %34 = arith.index_cast %c2_i32 : i32 to index
    %c0_28 = arith.constant 0 : index
    %c0_29 = arith.constant 0 : index
    %35 = vector.load %arg10[%34, %c0_28, %c0_29] : memref<6x8x128xf32, #tpu.memory_space<vmem>>, vector<1x8x128xf32>
    %36 = vector.shape_cast %35 : vector<1x8x128xf32> to vector<8x128xf32>
    %37 = vector.shape_cast %33 : vector<8x128xf32> to vector<1x8x128xf32>
    tpu.vector_store %arg10[%34, %c0_28, %c0_29], %37 {strides = array<i32>} : memref<6x8x128xf32, #tpu.memory_space<vmem>>, vector<1x8x128xf32>,
    %38 = arith.index_cast %c2_i32 : i32 to index
    %c0_30 = arith.constant 0 : index
    %c0_31 = arith.constant 0 : index
    %39 = vector.load %arg8[%38, %c0_30, %c0_31] : memref<6x8x128xf32, #tpu.memory_space<vmem>>, vector<1x8x128xf32>
    %40 = vector.shape_cast %39 : vector<1x8x128xf32> to vector<8x128xf32>
    %c0_32 = arith.constant 0 : index
    %c0_33 = arith.constant 0 : index
    %41 = vector.load %arg3[%c0_32, %c0_33] : memref<128x128xf32, #tpu.memory_space<vmem>>, vector<128x128xf32>
    %cst_34 = arith.constant dense<0.000000e+00> : vector<8x128xf32>
    %42 = tpu.matmul %33, %41, %cst_34 {dimension_numbers = #tpu.dot_dimension_numbers<[1], [0], [0], [1], [0, 0, 1, 1], [], []>} : vector<8x128xf32>, vector<128x128xf32>, vector<8x128xf32> -> vector<8x128xf32>
    %43 = arith.addf %40, %42 : vector<8x128xf32>
    %c3_i32 = arith.constant 3 : i32
    %44 = arith.index_cast %c3_i32 : i32 to index
    %c0_35 = arith.constant 0 : index
    %c0_36 = arith.constant 0 : index
    %45 = vector.load %arg10[%44, %c0_35, %c0_36] : memref<6x8x128xf32, #tpu.memory_space<vmem>>, vector<1x8x128xf32>
    %46 = vector.shape_cast %45 : vector<1x8x128xf32> to vector<8x128xf32>
    %47 = vector.shape_cast %43 : vector<8x128xf32> to vector<1x8x128xf32>
    tpu.vector_store %arg10[%44, %c0_35, %c0_36], %47 {strides = array<i32>} : memref<6x8x128xf32, #tpu.memory_space<vmem>>, vector<1x8x128xf32>,
    %48 = arith.index_cast %c3_i32 : i32 to index
    %c0_37 = arith.constant 0 : index
    %c0_38 = arith.constant 0 : index
    %49 = vector.load %arg8[%48, %c0_37, %c0_38] : memref<6x8x128xf32, #tpu.memory_space<vmem>>, vector<1x8x128xf32>
    %50 = vector.shape_cast %49 : vector<1x8x128xf32> to vector<8x128xf32>
    %c0_39 = arith.constant 0 : index
    %c0_40 = arith.constant 0 : index
    %51 = vector.load %arg3[%c0_39, %c0_40] : memref<128x128xf32, #tpu.memory_space<vmem>>, vector<128x128xf32>
    %cst_41 = arith.constant dense<0.000000e+00> : vector<8x128xf32>
    %52 = tpu.matmul %43, %51, %cst_41 {dimension_numbers = #tpu.dot_dimension_numbers<[1], [0], [0], [1], [0, 0, 1, 1], [], []>} : vector<8x128xf32>, vector<128x128xf32>, vector<8x128xf32> -> vector<8x128xf32>
    %53 = arith.addf %50, %52 : vector<8x128xf32>
    %c4_i32 = arith.constant 4 : i32
    %54 = arith.index_cast %c4_i32 : i32 to index
    %c0_42 = arith.constant 0 : index
    %c0_43 = arith.constant 0 : index
    %55 = vector.load %arg10[%54, %c0_42, %c0_43] : memref<6x8x128xf32, #tpu.memory_space<vmem>>, vector<1x8x128xf32>
    %56 = vector.shape_cast %55 : vector<1x8x128xf32> to vector<8x128xf32>
    %57 = vector.shape_cast %53 : vector<8x128xf32> to vector<1x8x128xf32>
    tpu.vector_store %arg10[%54, %c0_42, %c0_43], %57 {strides = array<i32>} : memref<6x8x128xf32, #tpu.memory_space<vmem>>, vector<1x8x128xf32>,
    %58 = arith.index_cast %c4_i32 : i32 to index
    %c0_44 = arith.constant 0 : index
    %c0_45 = arith.constant 0 : index
    %59 = vector.load %arg8[%58, %c0_44, %c0_45] : memref<6x8x128xf32, #tpu.memory_space<vmem>>, vector<1x8x128xf32>
    %60 = vector.shape_cast %59 : vector<1x8x128xf32> to vector<8x128xf32>
    %c0_46 = arith.constant 0 : index
    %c0_47 = arith.constant 0 : index
    %61 = vector.load %arg3[%c0_46, %c0_47] : memref<128x128xf32, #tpu.memory_space<vmem>>, vector<128x128xf32>
    %cst_48 = arith.constant dense<0.000000e+00> : vector<8x128xf32>
    %62 = tpu.matmul %53, %61, %cst_48 {dimension_numbers = #tpu.dot_dimension_numbers<[1], [0], [0], [1], [0, 0, 1, 1], [], []>} : vector<8x128xf32>, vector<128x128xf32>, vector<8x128xf32> -> vector<8x128xf32>
    %63 = arith.addf %60, %62 : vector<8x128xf32>
    %c5_i32 = arith.constant 5 : i32
    %64 = arith.index_cast %c5_i32 : i32 to index
    %c0_49 = arith.constant 0 : index
    %c0_50 = arith.constant 0 : index
    %65 = vector.load %arg10[%64, %c0_49, %c0_50] : memref<6x8x128xf32, #tpu.memory_space<vmem>>, vector<1x8x128xf32>
    %66 = vector.shape_cast %65 : vector<1x8x128xf32> to vector<8x128xf32>
    %67 = vector.shape_cast %63 : vector<8x128xf32> to vector<1x8x128xf32>
    tpu.vector_store %arg10[%64, %c0_49, %c0_50], %67 {strides = array<i32>} : memref<6x8x128xf32, #tpu.memory_space<vmem>>, vector<1x8x128xf32>,
    %68 = arith.index_cast %c5_i32 : i32 to index
    %c0_51 = arith.constant 0 : index
    %c0_52 = arith.constant 0 : index
    %69 = vector.load %arg8[%68, %c0_51, %c0_52] : memref<6x8x128xf32, #tpu.memory_space<vmem>>, vector<1x8x128xf32>
    %70 = vector.shape_cast %69 : vector<1x8x128xf32> to vector<8x128xf32>
    %c0_53 = arith.constant 0 : index
    %c0_54 = arith.constant 0 : index
    %71 = vector.load %arg3[%c0_53, %c0_54] : memref<128x128xf32, #tpu.memory_space<vmem>>, vector<128x128xf32>
    %cst_55 = arith.constant dense<0.000000e+00> : vector<8x128xf32>
    %72 = tpu.matmul %63, %71, %cst_55 {dimension_numbers = #tpu.dot_dimension_numbers<[1], [0], [0], [1], [0, 0, 1, 1], [], []>} : vector<8x128xf32>, vector<128x128xf32>, vector<8x128xf32> -> vector<8x128xf32>
    %73 = arith.addf %70, %72 : vector<8x128xf32>
    %c6_i32 = arith.constant 6 : i32
    %c0_56 = arith.constant 0 : index
    %c0_57 = arith.constant 0 : index
    %74 = vector.load %arg7[%c0_56, %c0_57] : memref<8x128xf32, #tpu.memory_space<vmem>>, vector<8x128xf32>
    tpu.vector_store %arg7[%c0_56, %c0_57], %73 {strides = array<i32>} : memref<8x128xf32, #tpu.memory_space<vmem>>, vector<8x128xf32>,
    %c0_58 = arith.constant 0 : index
    %c0_59 = arith.constant 0 : index
    %c0_60 = arith.constant 0 : index
    %75 = vector.load %arg10[%c0_58, %c0_59, %c0_60] : memref<6x8x128xf32, #tpu.memory_space<vmem>>, vector<6x8x128xf32>
    %76 = vector.shape_cast %75 : vector<6x8x128xf32> to vector<48x128xf32>
    %c0_61 = arith.constant 0 : index
    %c0_62 = arith.constant 0 : index
    %c0_63 = arith.constant 0 : index
    %77 = vector.load %arg9[%c0_61, %c0_62, %c0_63] : memref<6x8x128xf32, #tpu.memory_space<vmem>>, vector<6x8x128xf32>
    %78 = vector.shape_cast %77 : vector<6x8x128xf32> to vector<48x128xf32>
    %c0_64 = arith.constant 0 : index
    %c0_65 = arith.constant 0 : index
    %79 = vector.load %arg4[%c0_64, %c0_65] : memref<128x128xf32, #tpu.memory_space<vmem>>, vector<128x128xf32>
    %cst_66 = arith.constant dense<0.000000e+00> : vector<48x128xf32>
    %80 = tpu.matmul %76, %79, %cst_66 {dimension_numbers = #tpu.dot_dimension_numbers<[1], [0], [0], [1], [0, 0, 1, 1], [], []>} : vector<48x128xf32>, vector<128x128xf32>, vector<48x128xf32> -> vector<48x128xf32>
    %81 = arith.addf %78, %80 : vector<48x128xf32>
    %cst_67 = arith.constant dense<0xFF800000> : vector<48xf32>
    %82 = vector.multi_reduction <maximumf>, %81, %cst_67 [1] : vector<48x128xf32> to vector<48xf32>
    %83 = vector.shape_cast %82 : vector<48xf32> to vector<48x1xf32>
    %84 = vector.broadcast %83 : vector<48x1xf32> to vector<48x128xf32>
    %85 = arith.subf %81, %84 : vector<48x128xf32>
    %86 = math.exp %85 : vector<48x128xf32>
    %cst_68 = arith.constant dense<0.000000e+00> : vector<48xf32>
    %87 = vector.multi_reduction <add>, %86, %cst_68 [1] : vector<48x128xf32> to vector<48xf32>
    %88 = vector.shape_cast %87 : vector<48xf32> to vector<48x1xf32>
    %89 = math.log %88 : vector<48x1xf32>
    %90 = vector.broadcast %89 : vector<48x1xf32> to vector<48x128xf32>
    %91 = arith.subf %85, %90 : vector<48x128xf32>
    %92 = vector.shape_cast %91 : vector<48x128xf32> to vector<6x8x128xf32>
    %c0_69 = arith.constant 0 : index
    %c0_70 = arith.constant 0 : index
    %c0_71 = arith.constant 0 : index
    %93 = vector.load %arg6[%c0_69, %c0_70, %c0_71] : memref<6x8x128xf32, #tpu.memory_space<vmem>>, vector<6x8x128xf32>
    tpu.vector_store %arg6[%c0_69, %c0_70, %c0_71], %92 {strides = array<i32>} : memref<6x8x128xf32, #tpu.memory_space<vmem>>, vector<6x8x128xf32>,
    return
  }
}

</mosaic_0001>

<llo_original>
// kernel: tpu_custom_call.1
$region0: #{tpu_custom_call.1}
  #allocation0 [shape = 'u32[]', space=smem, size = 0x4, offset = 0x4, fixed_abs, tag = 'smem constant byte address 0x4 - core index']
  #allocation1 [shape = 'u32[144,128]{1,0:T(1,128)}', space=vmem, size = 0x12000, scoped, tag = 'internal scratch']
  #allocation2 [shape = 'f32[6,8,128]{2,1,0:T(8,128)}', space=vmem, size = 0x6000, scoped, tag = 'scratch operand']
  #allocation3 [shape = 'f32[6,8,128]{2,1,0:T(8,128)}', space=vmem, size = 0x6000, scoped, tag = 'scratch operand']
  #allocation4 [shape = 'f32[6,8,128]{2,1,0:T(8,128)}', space=vmem, size = 0x6000, scoped, tag = 'scratch operand']
  %s0 = inlined_call_operand.hbm [shape: f32[6,8,128], index: 0, kind: input, shape index: {}]
  %s1 = inlined_call_operand.hbm [shape: f32[8,128], index: 1, kind: input, shape index: {}]
  %s2 = inlined_call_operand.hbm [shape: f32[128,256], index: 2, kind: input, shape index: {}]
  %s3 = inlined_call_operand.hbm [shape: f32[128,128], index: 3, kind: input, shape index: {}]
  %s4 = inlined_call_operand.hbm [shape: f32[128,128], index: 4, kind: input, shape index: {}]
  %s5 = inlined_call_operand.vmem [shape: f32[1,256], index: 5, kind: input, shape index: {}]
  %s6 = inlined_call_operand.hbm [shape: f32[6,8,128], index: 6, kind: output, shape index: {0}]
  %s7 = inlined_call_operand.hbm [shape: f32[8,128], index: 7, kind: output, shape index: {1}]
  %8 = xla_tuple %s6, %s7
  %s9 = sld [smem:[#allocation0]]
  $region62: #{tpu_custom_call.1} parent=0
    _
  %s11 = ssub.s32 1, %s9
  %s12 = scalar_select 0, %s11, %s9
  $region1: #{tpu_custom_call.1} parent=0
    #allocation5 [shape = 'u8[24576]{0}', space=vmem, size = 0x6000, scoped, tag = 'input window, operand 0, single buffered']
    #allocation6 [shape = 's32[1]{0}', space=sflag, size = 0x4, scoped, tag = 'scoped memory for tpu_custom_call.1']
    #allocation7 [shape = 's32[1]{0}', space=sflag, size = 0x4, scoped, tag = 'scoped memory for tpu_custom_call.1']
    #allocation8 [shape = 'u8[4096]{0}', space=vmem, size = 0x1000, scoped, tag = 'input window, operand 1, single buffered']
    #allocation9 [shape = 's32[1]{0}', space=sflag, size = 0x4, scoped, tag = 'scoped memory for tpu_custom_call.1']
    #allocation10 [shape = 'u8[131072]{0}', space=vmem, size = 0x20000, scoped, tag = 'input window, operand 2, single buffered']
    #allocation11 [shape = 'u8[65536]{0}', space=vmem, size = 0x10000, scoped, tag = 'input window, operand 3, single buffered']
    #allocation12 [shape = 's32[1]{0}', space=sflag, size = 0x4, scoped, tag = 'scoped memory for tpu_custom_call.1']
    #allocation13 [shape = 'u8[65536]{0}', space=vmem, size = 0x10000, scoped, tag = 'input window, operand 4, single buffered']
    #allocation14 [shape = 'u8[24576]{0}', space=vmem, size = 0x6000, scoped, tag = 'output window, operand 0, single buffered']
    #allocation15 [shape = 'u8[4096]{0}', space=vmem, size = 0x1000, scoped, tag = 'output window, operand 1, single buffered']
    #allocation16 [shape = 's32[1]{0}', space=sflag, size = 0x4, scoped, tag = 'scoped memory for tpu_custom_call.1']
    %13 = vsyncpa [#allocation6], 0
    %14 = vsyncpa [#allocation9], 0
    %15 = vsyncpa [#allocation12], 0
    %16 = vsyncpa [#allocation7], 0
    %17 = vsyncpa [#allocation16], 0
    // Predicated region
    $region2: #{tpu_custom_call.1} parent=1 // pred_check
      _
    $region3: #{tpu_custom_call.1} parent=1 // pred_check_branch
      %19 = sbr.rel (0) target = $region5
    $region4: #{tpu_custom_call.1} parent=1 // pred_region
      %s21 = ssub.s32 768, 768
      %22 = vsyncadd [#allocation6], %s21
      %s23 = sshll.u32 [#allocation5], 4
      %s24 = int_to_ptr.vmem [resolvable:$true] %s23
      %29 = dma.hbm_to_vmem [thread:$0]  %s0, 768, %s24, [#allocation6], 128, 128, 8
    $region5: #{tpu_custom_call.1} parent=1 // pred_fallthru
      _
    // Predicated region
    $region6: #{tpu_custom_call.1} parent=1 // pred_check
      _
    $region7: #{tpu_custom_call.1} parent=1 // pred_check_branch
      %31 = sbr.rel (0) target = $region9
    $region8: #{tpu_custom_call.1} parent=1 // pred_region
      %s33 = ssub.s32 128, 128
      %34 = vsyncadd [#allocation9], %s33
      %s36 = sshll.u32 [#allocation8], 4
      %s37 = int_to_ptr.vmem [resolvable:$true] %s36
      %39 = dma.hbm_to_vmem [thread:$0]  %s1, 128, %s37, [#allocation9]
    $region9: #{tpu_custom_call.1} parent=1 // pred_fallthru
      _
    // Predicated region
    $region10: #{tpu_custom_call.1} parent=1 // pred_check
      _
    $region11: #{tpu_custom_call.1} parent=1 // pred_check_branch
      %41 = sbr.rel (0) target = $region13
    $region12: #{tpu_custom_call.1} parent=1 // pred_region
      %s43 = ssub.s32 4096, 4096
      %44 = vsyncadd [#allocation9], %s43
      %s45 = sshll.u32 [#allocation10], 4
      %s46 = int_to_ptr.vmem [resolvable:$true] %s45
      %51 = dma.hbm_to_vmem [thread:$0]  %s2, 4096, %s46, [#allocation9], 256, 256, 16
    $region13: #{tpu_custom_call.1} parent=1 // pred_fallthru
      _
    // Predicated region
    $region14: #{tpu_custom_call.1} parent=1 // pred_check
      _
    $region15: #{tpu_custom_call.1} parent=1 // pred_check_branch
      %53 = sbr.rel (0) target = $region17
    $region16: #{tpu_custom_call.1} parent=1 // pred_region
      %s55 = ssub.s32 2048, 2048
      %56 = vsyncadd [#allocation12], %s55
      %s57 = sshll.u32 [#allocation11], 4
      %s58 = int_to_ptr.vmem [resolvable:$true] %s57
      %63 = dma.hbm_to_vmem [thread:$0]  %s3, 2048, %s58, [#allocation12], 128, 128, 8
    $region17: #{tpu_custom_call.1} parent=1 // pred_fallthru
      _
    // Predicated region
    $region18: #{tpu_custom_call.1} parent=1 // pred_check
      _
    $region19: #{tpu_custom_call.1} parent=1 // pred_check_branch
      %65 = sbr.rel (0) target = $region21
    $region20: #{tpu_custom_call.1} parent=1 // pred_region
      %s67 = ssub.s32 2048, 2048
      %68 = vsyncadd [#allocation12], %s67
      %s69 = sshll.u32 [#allocation13], 4
      %s70 = int_to_ptr.vmem [resolvable:$true] %s69
      %75 = dma.hbm_to_vmem [thread:$0]  %s4, 2048, %s70, [#allocation12], 128, 128, 8
    $region21: #{tpu_custom_call.1} parent=1 // pred_fallthru
      _
    // Predicated region
    $region22: #{tpu_custom_call.1} parent=1 // pred_check
      _
    $region23: #{tpu_custom_call.1} parent=1 // pred_check_branch
      %77 = sbr.rel (0) target = $region25
    $region24: #{tpu_custom_call.1} parent=1 // pred_region
      _
    $region25: #{tpu_custom_call.1} parent=1 // pred_fallthru
      _
    // Predicated region
    $region26: #{tpu_custom_call.1} parent=1 // pred_check
      _
    $region27: #{tpu_custom_call.1} parent=1 // pred_check_branch
      %79 = sbr.rel (0) target = $region29
    $region28: #{tpu_custom_call.1} parent=1 // pred_region
      %80 = dma.done [#allocation6], 768
    $region29: #{tpu_custom_call.1} parent=1 // pred_fallthru
      _
    // Predicated region
    $region30: #{tpu_custom_call.1} parent=1 // pred_check
      _
    $region31: #{tpu_custom_call.1} parent=1 // pred_check_branch
      %82 = sbr.rel (0) target = $region33
    $region32: #{tpu_custom_call.1} parent=1 // pred_region
      %83 = dma.done [#allocation9], 128
    $region33: #{tpu_custom_call.1} parent=1 // pred_fallthru
      _
    // Predicated region
    $region34: #{tpu_custom_call.1} parent=1 // pred_check
      _
    $region35: #{tpu_custom_call.1} parent=1 // pred_check_branch
      %85 = sbr.rel (0) target = $region37
    $region36: #{tpu_custom_call.1} parent=1 // pred_region
      %86 = dma.done [#allocation9], 4096
    $region37: #{tpu_custom_call.1} parent=1 // pred_fallthru
      _
    // Predicated region
    $region38: #{tpu_custom_call.1} parent=1 // pred_check
      _
    $region39: #{tpu_custom_call.1} parent=1 // pred_check_branch
      %88 = sbr.rel (0) target = $region41
    $region40: #{tpu_custom_call.1} parent=1 // pred_region
      %89 = dma.done [#allocation12], 2048
    $region41: #{tpu_custom_call.1} parent=1 // pred_fallthru
      _
    // Predicated region
    $region42: #{tpu_custom_call.1} parent=1 // pred_check
      _
    $region43: #{tpu_custom_call.1} parent=1 // pred_check_branch
      %91 = sbr.rel (0) target = $region45
    $region44: #{tpu_custom_call.1} parent=1 // pred_region
      %92 = dma.done [#allocation12], 2048
    $region45: #{tpu_custom_call.1} parent=1 // pred_fallthru
      _
    %v93 = vld [vmem:[#allocation5] sm:$0xff]
    %v94 = vld [vmem:[#allocation5 + $0x8] sm:$0xff]
    %v95 = vld [vmem:[#allocation5 + $0x10] sm:$0xff]
    %v96 = vld [vmem:[#allocation5 + $0x18] sm:$0xff]
    %v97 = vld [vmem:[#allocation5 + $0x20] sm:$0xff]
    %v98 = vld [vmem:[#allocation5 + $0x28] sm:$0xff]
    %v99 = vld [vmem:[#allocation10] sm:$0xff]
    %v100 = vld [vmem:[#allocation10 + $0x8] sm:$0xff]
    %v101 = vld [vmem:[#allocation10 + $0x10] sm:$0xff]
    %v102 = vld [vmem:[#allocation10 + $0x18] sm:$0xff]
    %v103 = vld [vmem:[#allocation10 + $0x20] sm:$0xff]
    %v104 = vld [vmem:[#allocation10 + $0x28] sm:$0xff]
    %v105 = vld [vmem:[#allocation10 + $0x30] sm:$0xff]
    %v106 = vld [vmem:[#allocation10 + $0x38] sm:$0xff]
    %v107 = vld [vmem:[#allocation10 + $0x40] sm:$0xff]
    %v108 = vld [vmem:[#allocation10 + $0x48] sm:$0xff]
    %v109 = vld [vmem:[#allocation10 + $0x50] sm:$0xff]
    %v110 = vld [vmem:[#allocation10 + $0x58] sm:$0xff]
    %v111 = vld [vmem:[#allocation10 + $0x60] sm:$0xff]
    %v112 = vld [vmem:[#allocation10 + $0x68] sm:$0xff]
    %v113 = vld [vmem:[#allocation10 + $0x70] sm:$0xff]
    %v114 = vld [vmem:[#allocation10 + $0x78] sm:$0xff]
    %v115 = vld [vmem:[#allocation10 + $0x80] sm:$0xff]
    %v116 = vld [vmem:[#allocation10 + $0x88] sm:$0xff]
    %v117 = vld [vmem:[#allocation10 + $0x90] sm:$0xff]
    %v118 = vld [vmem:[#allocation10 + $0x98] sm:$0xff]
    %v119 = vld [vmem:[#allocation10 + $0xa0] sm:$0xff]
    %v120 = vld [vmem:[#allocation10 + $0xa8] sm:$0xff]
    %v121 = vld [vmem:[#allocation10 + $0xb0] sm:$0xff]
    %v122 = vld [vmem:[#allocation10 + $0xb8] sm:$0xff]
    %v123 = vld [vmem:[#allocation10 + $0xc0] sm:$0xff]
    %v124 = vld [vmem:[#allocation10 + $0xc8] sm:$0xff]
    %v125 = vld [vmem:[#allocation10 + $0xd0] sm:$0xff]
    %v126 = vld [vmem:[#allocation10 + $0xd8] sm:$0xff]
    %v127 = vld [vmem:[#allocation10 + $0xe0] sm:$0xff]
    %v128 = vld [vmem:[#allocation10 + $0xe8] sm:$0xff]
    %v129 = vld [vmem:[#allocation10 + $0xf0] sm:$0xff]
    %v130 = vld [vmem:[#allocation10 + $0xf8] sm:$0xff]
    %v131 = vld [vmem:[%s5] sm:$0x3]
    %v133 = vlaneseq
    %v134 = vshrl.u32 %v133, 7
    %v135 = vsub.s32 0, %v134
    %v136 = vrot.slane %v131, %v135
    %v137 = vlaneseq
    %v138 = vshrl.u32 %v137, 7
    %v139 = vsub.s32 1, %v138
    %v140 = vrot.slane %v131, %v139
    %143 = vmatprep.subr.mxu0 %v100
    %144 = vmatpush1.msra.mxu0 %v99
    %145 = vmatprep.subr.mxu0 %v102
    %146 = vmatpush1.msra.mxu0 %v101
    %147 = vmatprep.subr.mxu0 %v104
    %148 = vmatpush1.msra.mxu0 %v103
    %149 = vmatprep.subr.mxu0 %v106
    %150 = vmatpush1.msra.mxu0 %v105
    %151 = vmatprep.subr.mxu0 %v108
    %152 = vmatpush1.msra.mxu0 %v107
    %153 = vmatprep.subr.mxu0 %v110
    %154 = vmatpush1.msra.mxu0 %v109
    %155 = vmatprep.subr.mxu0 %v112
    %156 = vmatpush1.msra.mxu0 %v111
    %157 = vmatprep.subr.mxu0 %v114
    %158 = vmatpush1.msra.mxu0 %v113
    %159 = vmatprep.subr.mxu0 %v116
    %160 = vmatpush1.msra.mxu0 %v115
    %161 = vmatprep.subr.mxu0 %v118
    %162 = vmatpush1.msra.mxu0 %v117
    %163 = vmatprep.subr.mxu0 %v120
    %164 = vmatpush1.msra.mxu0 %v119
    %165 = vmatprep.subr.mxu0 %v122
    %166 = vmatpush1.msra.mxu0 %v121
    %167 = vmatprep.subr.mxu0 %v124
    %168 = vmatpush1.msra.mxu0 %v123
    %169 = vmatprep.subr.mxu0 %v126
    %170 = vmatpush1.msra.mxu0 %v125
    %171 = vmatprep.subr.mxu0 %v128
    %172 = vmatpush1.msra.mxu0 %v127
    %173 = vmatprep.subr.mxu0 %v130
    %174 = vmatpush1.msra.mxu0 %v129
    %175 = vmatprep.subr.mxu0 0.0
    %176 = vmatpush1.msra.mxu0 0.0
    %177 = vmatprep.subr.mxu0 0.0
    %178 = vmatpush1.msra.mxu0 0.0
    %179 = vmatprep.subr.mxu0 0.0
    %180 = vmatpush1.msra.mxu0 0.0
    %181 = vmatprep.subr.mxu0 0.0
    %182 = vmatpush1.msra.mxu0 0.0
    %183 = vmatprep.subr.mxu0 0.0
    %184 = vmatpush1.msra.mxu0 0.0
    %185 = vmatprep.subr.mxu0 0.0
    %186 = vmatpush1.msra.mxu0 0.0
    %187 = vmatprep.subr.mxu0 0.0
    %188 = vmatpush1.msra.mxu0 0.0
    %189 = vmatprep.subr.mxu0 0.0
    %190 = vmatpush1.msra.mxu0 0.0
    %191 = vmatprep.subr.mxu0 0.0
    %192 = vmatpush1.msra.mxu0 0.0
    %193 = vmatprep.subr.mxu0 0.0
    %194 = vmatpush1.msra.mxu0 0.0
    %195 = vmatprep.subr.mxu0 0.0
    %196 = vmatpush1.msra.mxu0 0.0
    %197 = vmatprep.subr.mxu0 0.0
    %198 = vmatpush1.msra.mxu0 0.0
    %199 = vmatprep.subr.mxu0 0.0
    %200 = vmatpush1.msra.mxu0 0.0
    %201 = vmatprep.subr.mxu0 0.0
    %202 = vmatpush1.msra.mxu0 0.0
    %203 = vmatprep.subr.mxu0 0.0
    %204 = vmatpush1.msra.mxu0 0.0
    %205 = vmatprep.subr.mxu0 0.0
    %206 = vmatpush1.msra.mxu0 0.0
    %207 = vmatprep.mubr.f32.mxu0 0.0
    %208 = vmatmul.mubr.f32.gmra.mrb[0].mxu0 %v93
    %v209 = vpop.f32.mrb[0].mxu0
    %v210 = vadd.f32 %v136, %v209
    %v211 = vpop.f32.mrb[0].mxu0
    %v212 = vadd.f32 %v140, %v211
    %213 = vmatprep.mubr.f32.mxu0 0.0
    %214 = vmatmul.mubr.f32.gmra.mrb[0].mxu0 %v94
    %v215 = vpop.f32.mrb[0].mxu0
    %v216 = vadd.f32 %v136, %v215
    %v217 = vpop.f32.mrb[0].mxu0
    %v218 = vadd.f32 %v140, %v217
    %219 = vmatprep.mubr.f32.mxu0 0.0
    %220 = vmatmul.mubr.f32.gmra.mrb[0].mxu0 %v95
    %v221 = vpop.f32.mrb[0].mxu0
    %v222 = vadd.f32 %v136, %v221
    %v223 = vpop.f32.mrb[0].mxu0
    %v224 = vadd.f32 %v140, %v223
    %225 = vmatprep.mubr.f32.mxu0 0.0
    %226 = vmatmul.mubr.f32.gmra.mrb[0].mxu0 %v96
    %v227 = vpop.f32.mrb[0].mxu0
    %v228 = vadd.f32 %v136, %v227
    %v229 = vpop.f32.mrb[0].mxu0
    %v230 = vadd.f32 %v140, %v229
    %231 = vmatprep.mubr.f32.mxu0 0.0
    %232 = vmatmul.mubr.f32.gmra.mrb[0].mxu0 %v97
    %v233 = vpop.f32.mrb[0].mxu0
    %v234 = vadd.f32 %v136, %v233
    %v235 = vpop.f32.mrb[0].mxu0
    %v236 = vadd.f32 %v140, %v235
    %237 = vmatprep.mubr.f32.mxu0 0.0
    %238 = vmatmul.mubr.f32.gmra.mrb[0].mxu0 %v98
    %v239 = vpop.f32.mrb[0].mxu0
    %v240 = vadd.f32 %v136, %v239
    %v241 = vpop.f32.mrb[0].mxu0
    %v242 = vadd.f32 %v140, %v241
    %243 = vdwg.mxu0
    %244 = vst [vmem:[#allocation2] sm:$0xff] %v210
    %245 = vst [vmem:[#allocation2 + $0x8] sm:$0xff] %v216
    %246 = vst [vmem:[#allocation2 + $0x10] sm:$0xff] %v222
    %247 = vst [vmem:[#allocation2 + $0x18] sm:$0xff] %v228
    %248 = vst [vmem:[#allocation2 + $0x20] sm:$0xff] %v234
    %249 = vst [vmem:[#allocation2 + $0x28] sm:$0xff] %v240
    %250 = vst [vmem:[#allocation3] sm:$0xff] %v212
    %251 = vst [vmem:[#allocation3 + $0x8] sm:$0xff] %v218
    %252 = vst [vmem:[#allocation3 + $0x10] sm:$0xff] %v224
    %253 = vst [vmem:[#allocation3 + $0x18] sm:$0xff] %v230
    %254 = vst [vmem:[#allocation3 + $0x20] sm:$0xff] %v236
    %255 = vst [vmem:[#allocation3 + $0x28] sm:$0xff] %v242
    %v256 = vld [vmem:[#allocation8] sm:$0xff]
    %257 = vst [vmem:[#allocation4] sm:$0xff] %v256
    %v258 = vld [vmem:[#allocation2] sm:$0xff]
    %v259 = vld [vmem:[#allocation11] sm:$0xff]
    %v260 = vld [vmem:[#allocation11 + $0x8] sm:$0xff]
    %v261 = vld [vmem:[#allocation11 + $0x10] sm:$0xff]
    %v262 = vld [vmem:[#allocation11 + $0x18] sm:$0xff]
    %v263 = vld [vmem:[#allocation11 + $0x20] sm:$0xff]
    %v264 = vld [vmem:[#allocation11 + $0x28] sm:$0xff]
    %v265 = vld [vmem:[#allocation11 + $0x30] sm:$0xff]
    %v266 = vld [vmem:[#allocation11 + $0x38] sm:$0xff]
    %v267 = vld [vmem:[#allocation11 + $0x40] sm:$0xff]
    %v268 = vld [vmem:[#allocation11 + $0x48] sm:$0xff]
    %v269 = vld [vmem:[#allocation11 + $0x50] sm:$0xff]
    %v270 = vld [vmem:[#allocation11 + $0x58] sm:$0xff]
    %v271 = vld [vmem:[#allocation11 + $0x60] sm:$0xff]
    %v272 = vld [vmem:[#allocation11 + $0x68] sm:$0xff]
    %v273 = vld [vmem:[#allocation11 + $0x70] sm:$0xff]
    %v274 = vld [vmem:[#allocation11 + $0x78] sm:$0xff]
    %275 = vmatprep.subr.mxu0 0.0
    %276 = vmatpush1.msra.mxu0 %v259
    %277 = vmatprep.subr.mxu0 0.0
    %278 = vmatpush1.msra.mxu0 %v260
    %279 = vmatprep.subr.mxu0 0.0
    %280 = vmatpush1.msra.mxu0 %v261
    %281 = vmatprep.subr.mxu0 0.0
    %282 = vmatpush1.msra.mxu0 %v262
    %283 = vmatprep.subr.mxu0 0.0
    %284 = vmatpush1.msra.mxu0 %v263
    %285 = vmatprep.subr.mxu0 0.0
    %286 = vmatpush1.msra.mxu0 %v264
    %287 = vmatprep.subr.mxu0 0.0
    %288 = vmatpush1.msra.mxu0 %v265
    %289 = vmatprep.subr.mxu0 0.0
    %290 = vmatpush1.msra.mxu0 %v266
    %291 = vmatprep.subr.mxu0 0.0
    %292 = vmatpush1.msra.mxu0 %v267
    %293 = vmatprep.subr.mxu0 0.0
    %294 = vmatpush1.msra.mxu0 %v268
    %295 = vmatprep.subr.mxu0 0.0
    %296 = vmatpush1.msra.mxu0 %v269
    %297 = vmatprep.subr.mxu0 0.0
    %298 = vmatpush1.msra.mxu0 %v270
    %299 = vmatprep.subr.mxu0 0.0
    %300 = vmatpush1.msra.mxu0 %v271
    %301 = vmatprep.subr.mxu0 0.0
    %302 = vmatpush1.msra.mxu0 %v272
    %303 = vmatprep.subr.mxu0 0.0
    %304 = vmatpush1.msra.mxu0 %v273
    %305 = vmatprep.subr.mxu0 0.0
    %306 = vmatpush1.msra.mxu0 %v274
    %307 = vmatprep.subr.mxu0 0.0
    %308 = vmatpush1.msra.mxu0 0.0
    %309 = vmatprep.subr.mxu0 0.0
    %310 = vmatpush1.msra.mxu0 0.0
    %311 = vmatprep.subr.mxu0 0.0
    %312 = vmatpush1.msra.mxu0 0.0
    %313 = vmatprep.subr.mxu0 0.0
    %314 = vmatpush1.msra.mxu0 0.0
    %315 = vmatprep.subr.mxu0 0.0
    %316 = vmatpush1.msra.mxu0 0.0
    %317 = vmatprep.subr.mxu0 0.0
    %318 = vmatpush1.msra.mxu0 0.0
    %319 = vmatprep.subr.mxu0 0.0
    %320 = vmatpush1.msra.mxu0 0.0
    %321 = vmatprep.subr.mxu0 0.0
    %322 = vmatpush1.msra.mxu0 0.0
    %323 = vmatprep.subr.mxu0 0.0
    %324 = vmatpush1.msra.mxu0 0.0
    %325 = vmatprep.subr.mxu0 0.0
    %326 = vmatpush1.msra.mxu0 0.0
    %327 = vmatprep.subr.mxu0 0.0
    %328 = vmatpush1.msra.mxu0 0.0
    %329 = vmatprep.subr.mxu0 0.0
    %330 = vmatpush1.msra.mxu0 0.0
    %331 = vmatprep.subr.mxu0 0.0
    %332 = vmatpush1.msra.mxu0 0.0
    %333 = vmatprep.subr.mxu0 0.0
    %334 = vmatpush1.msra.mxu0 0.0
    %335 = vmatprep.subr.mxu0 0.0
    %336 = vmatpush1.msra.mxu0 0.0
    %337 = vmatprep.subr.mxu0 0.0
    %338 = vmatpush1.msra.mxu0 0.0
    %339 = vmatprep.mubr.f32.mxu0 0.0
    %340 = vmatmul.mubr.f32.gmra.mrb[0].mxu0 %v256
    %v341 = vpop.f32.mrb[0].mxu0
    %v342 = vadd.f32 0.0, %v341
    %v343 = vpop.f32.mrb[0].mxu0
    %344 = vdwg.mxu0
    %v345 = vadd.f32 %v258, %v342
    %s346 = scalar_lea.vmem [#allocation4], 8
    %347 = vst [vmem:[%s346] sm:$0xff] %v345
    %s348 = scalar_lea.vmem [#allocation2], 8
    %v349 = vld [vmem:[%s348] sm:$0xff]
    %v350 = vld [vmem:[#allocation11] sm:$0xff]
    %v351 = vld [vmem:[#allocation11 + $0x8] sm:$0xff]
    %v352 = vld [vmem:[#allocation11 + $0x10] sm:$0xff]
    %v353 = vld [vmem:[#allocation11 + $0x18] sm:$0xff]
    %v354 = vld [vmem:[#allocation11 + $0x20] sm:$0xff]
    %v355 = vld [vmem:[#allocation11 + $0x28] sm:$0xff]
    %v356 = vld [vmem:[#allocation11 + $0x30] sm:$0xff]
    %v357 = vld [vmem:[#allocation11 + $0x38] sm:$0xff]
    %v358 = vld [vmem:[#allocation11 + $0x40] sm:$0xff]
    %v359 = vld [vmem:[#allocation11 + $0x48] sm:$0xff]
    %v360 = vld [vmem:[#allocation11 + $0x50] sm:$0xff]
    %v361 = vld [vmem:[#allocation11 + $0x58] sm:$0xff]
    %v362 = vld [vmem:[#allocation11 + $0x60] sm:$0xff]
    %v363 = vld [vmem:[#allocation11 + $0x68] sm:$0xff]
    %v364 = vld [vmem:[#allocation11 + $0x70] sm:$0xff]
    %v365 = vld [vmem:[#allocation11 + $0x78] sm:$0xff]
    %366 = vmatprep.subr.mxu0 0.0
    %367 = vmatpush1.msra.mxu0 %v350
    %368 = vmatprep.subr.mxu0 0.0
    %369 = vmatpush1.msra.mxu0 %v351
    %370 = vmatprep.subr.mxu0 0.0
    %371 = vmatpush1.msra.mxu0 %v352
    %372 = vmatprep.subr.mxu0 0.0
    %373 = vmatpush1.msra.mxu0 %v353
    %374 = vmatprep.subr.mxu0 0.0
    %375 = vmatpush1.msra.mxu0 %v354
    %376 = vmatprep.subr.mxu0 0.0
    %377 = vmatpush1.msra.mxu0 %v355
    %378 = vmatprep.subr.mxu0 0.0
    %379 = vmatpush1.msra.mxu0 %v356
    %380 = vmatprep.subr.mxu0 0.0
    %381 = vmatpush1.msra.mxu0 %v357
    %382 = vmatprep.subr.mxu0 0.0
    %383 = vmatpush1.msra.mxu0 %v358
    %384 = vmatprep.subr.mxu0 0.0
    %385 = vmatpush1.msra.mxu0 %v359
    %386 = vmatprep.subr.mxu0 0.0
    %387 = vmatpush1.msra.mxu0 %v360
    %388 = vmatprep.subr.mxu0 0.0
    %389 = vmatpush1.msra.mxu0 %v361
    %390 = vmatprep.subr.mxu0 0.0
    %391 = vmatpush1.msra.mxu0 %v362
    %392 = vmatprep.subr.mxu0 0.0
    %393 = vmatpush1.msra.mxu0 %v363
    %394 = vmatprep.subr.mxu0 0.0
    %395 = vmatpush1.msra.mxu0 %v364
    %396 = vmatprep.subr.mxu0 0.0
    %397 = vmatpush1.msra.mxu0 %v365
    %398 = vmatprep.subr.mxu0 0.0
    %399 = vmatpush1.msra.mxu0 0.0
    %400 = vmatprep.subr.mxu0 0.0
    %401 = vmatpush1.msra.mxu0 0.0
    %402 = vmatprep.subr.mxu0 0.0
    %403 = vmatpush1.msra.mxu0 0.0
    %404 = vmatprep.subr.mxu0 0.0
    %405 = vmatpush1.msra.mxu0 0.0
    %406 = vmatprep.subr.mxu0 0.0
    %407 = vmatpush1.msra.mxu0 0.0
    %408 = vmatprep.subr.mxu0 0.0
    %409 = vmatpush1.msra.mxu0 0.0
    %410 = vmatprep.subr.mxu0 0.0
    %411 = vmatpush1.msra.mxu0 0.0
    %412 = vmatprep.subr.mxu0 0.0
    %413 = vmatpush1.msra.mxu0 0.0
    %414 = vmatprep.subr.mxu0 0.0
    %415 = vmatpush1.msra.mxu0 0.0
    %416 = vmatprep.subr.mxu0 0.0
    %417 = vmatpush1.msra.mxu0 0.0
    %418 = vmatprep.subr.mxu0 0.0
    %419 = vmatpush1.msra.mxu0 0.0
    %420 = vmatprep.subr.mxu0 0.0
    %421 = vmatpush1.msra.mxu0 0.0
    %422 = vmatprep.subr.mxu0 0.0
    %423 = vmatpush1.msra.mxu0 0.0
    %424 = vmatprep.subr.mxu0 0.0
    %425 = vmatpush1.msra.mxu0 0.0
    %426 = vmatprep.subr.mxu0 0.0
    %427 = vmatpush1.msra.mxu0 0.0
    %428 = vmatprep.subr.mxu0 0.0
    %429 = vmatpush1.msra.mxu0 0.0
    %430 = vmatprep.mubr.f32.mxu0 0.0
    %431 = vmatmul.mubr.f32.gmra.mrb[0].mxu0 %v345
    %v432 = vpop.f32.mrb[0].mxu0
    %v433 = vadd.f32 0.0, %v432
    %v434 = vpop.f32.mrb[0].mxu0
    %435 = vdwg.mxu0
    %v436 = vadd.f32 %v349, %v433
    %s437 = scalar_lea.vmem [#allocation4], 16
    %438 = vst [vmem:[%s437] sm:$0xff] %v436
    %s439 = scalar_lea.vmem [#allocation2], 16
    %v440 = vld [vmem:[%s439] sm:$0xff]
    %v441 = vld [vmem:[#allocation11] sm:$0xff]
    %v442 = vld [vmem:[#allocation11 + $0x8] sm:$0xff]
    %v443 = vld [vmem:[#allocation11 + $0x10] sm:$0xff]
    %v444 = vld [vmem:[#allocation11 + $0x18] sm:$0xff]
    %v445 = vld [vmem:[#allocation11 + $0x20] sm:$0xff]
    %v446 = vld [vmem:[#allocation11 + $0x28] sm:$0xff]
    %v447 = vld [vmem:[#allocation11 + $0x30] sm:$0xff]
    %v448 = vld [vmem:[#allocation11 + $0x38] sm:$0xff]
    %v449 = vld [vmem:[#allocation11 + $0x40] sm:$0xff]
    %v450 = vld [vmem:[#allocation11 + $0x48] sm:$0xff]
    %v451 = vld [vmem:[#allocation11 + $0x50] sm:$0xff]
    %v452 = vld [vmem:[#allocation11 + $0x58] sm:$0xff]
    %v453 = vld [vmem:[#allocation11 + $0x60] sm:$0xff]
    %v454 = vld [vmem:[#allocation11 + $0x68] sm:$0xff]
    %v455 = vld [vmem:[#allocation11 + $0x70] sm:$0xff]
    %v456 = vld [vmem:[#allocation11 + $0x78] sm:$0xff]
    %457 = vmatprep.subr.mxu0 0.0
    %458 = vmatpush1.msra.mxu0 %v441
    %459 = vmatprep.subr.mxu0 0.0
    %460 = vmatpush1.msra.mxu0 %v442
    %461 = vmatprep.subr.mxu0 0.0
    %462 = vmatpush1.msra.mxu0 %v443
    %463 = vmatprep.subr.mxu0 0.0
    %464 = vmatpush1.msra.mxu0 %v444
    %465 = vmatprep.subr.mxu0 0.0
    %466 = vmatpush1.msra.mxu0 %v445
    %467 = vmatprep.subr.mxu0 0.0
    %468 = vmatpush1.msra.mxu0 %v446
    %469 = vmatprep.subr.mxu0 0.0
    %470 = vmatpush1.msra.mxu0 %v447
    %471 = vmatprep.subr.mxu0 0.0
    %472 = vmatpush1.msra.mxu0 %v448
    %473 = vmatprep.subr.mxu0 0.0
    %474 = vmatpush1.msra.mxu0 %v449
    %475 = vmatprep.subr.mxu0 0.0
    %476 = vmatpush1.msra.mxu0 %v450
    %477 = vmatprep.subr.mxu0 0.0
    %478 = vmatpush1.msra.mxu0 %v451
    %479 = vmatprep.subr.mxu0 0.0
    %480 = vmatpush1.msra.mxu0 %v452
    %481 = vmatprep.subr.mxu0 0.0
    %482 = vmatpush1.msra.mxu0 %v453
    %483 = vmatprep.subr.mxu0 0.0
    %484 = vmatpush1.msra.mxu0 %v454
    %485 = vmatprep.subr.mxu0 0.0
    %486 = vmatpush1.msra.mxu0 %v455
    %487 = vmatprep.subr.mxu0 0.0
    %488 = vmatpush1.msra.mxu0 %v456
    %489 = vmatprep.subr.mxu0 0.0
    %490 = vmatpush1.msra.mxu0 0.0
    %491 = vmatprep.subr.mxu0 0.0
    %492 = vmatpush1.msra.mxu0 0.0
    %493 = vmatprep.subr.mxu0 0.0
    %494 = vmatpush1.msra.mxu0 0.0
    %495 = vmatprep.subr.mxu0 0.0
    %496 = vmatpush1.msra.mxu0 0.0
    %497 = vmatprep.subr.mxu0 0.0
    %498 = vmatpush1.msra.mxu0 0.0
    %499 = vmatprep.subr.mxu0 0.0
    %500 = vmatpush1.msra.mxu0 0.0
    %501 = vmatprep.subr.mxu0 0.0
    %502 = vmatpush1.msra.mxu0 0.0
    %503 = vmatprep.subr.mxu0 0.0
    %504 = vmatpush1.msra.mxu0 0.0
    %505 = vmatprep.subr.mxu0 0.0
    %506 = vmatpush1.msra.mxu0 0.0
    %507 = vmatprep.subr.mxu0 0.0
    %508 = vmatpush1.msra.mxu0 0.0
    %509 = vmatprep.subr.mxu0 0.0
    %510 = vmatpush1.msra.mxu0 0.0
    %511 = vmatprep.subr.mxu0 0.0
    %512 = vmatpush1.msra.mxu0 0.0
    %513 = vmatprep.subr.mxu0 0.0
    %514 = vmatpush1.msra.mxu0 0.0
    %515 = vmatprep.subr.mxu0 0.0
    %516 = vmatpush1.msra.mxu0 0.0
    %517 = vmatprep.subr.mxu0 0.0
    %518 = vmatpush1.msra.mxu0 0.0
    %519 = vmatprep.subr.mxu0 0.0
    %520 = vmatpush1.msra.mxu0 0.0
    %521 = vmatprep.mubr.f32.mxu0 0.0
    %522 = vmatmul.mubr.f32.gmra.mrb[0].mxu0 %v436
    %v523 = vpop.f32.mrb[0].mxu0
    %v524 = vadd.f32 0.0, %v523
    %v525 = vpop.f32.mrb[0].mxu0
    %526 = vdwg.mxu0
    %v527 = vadd.f32 %v440, %v524
    %s528 = scalar_lea.vmem [#allocation4], 24
    %529 = vst [vmem:[%s528] sm:$0xff] %v527
    %s530 = scalar_lea.vmem [#allocation2], 24
    %v531 = vld [vmem:[%s530] sm:$0xff]
    %v532 = vld [vmem:[#allocation11] sm:$0xff]
    %v533 = vld [vmem:[#allocation11 + $0x8] sm:$0xff]
    %v534 = vld [vmem:[#allocation11 + $0x10] sm:$0xff]
    %v535 = vld [vmem:[#allocation11 + $0x18] sm:$0xff]
    %v536 = vld [vmem:[#allocation11 + $0x20] sm:$0xff]
    %v537 = vld [vmem:[#allocation11 + $0x28] sm:$0xff]
    %v538 = vld [vmem:[#allocation11 + $0x30] sm:$0xff]
    %v539 = vld [vmem:[#allocation11 + $0x38] sm:$0xff]
    %v540 = vld [vmem:[#allocation11 + $0x40] sm:$0xff]
    %v541 = vld [vmem:[#allocation11 + $0x48] sm:$0xff]
    %v542 = vld [vmem:[#allocation11 + $0x50] sm:$0xff]
    %v543 = vld [vmem:[#allocation11 + $0x58] sm:$0xff]
    %v544 = vld [vmem:[#allocation11 + $0x60] sm:$0xff]
    %v545 = vld [vmem:[#allocation11 + $0x68] sm:$0xff]
    %v546 = vld [vmem:[#allocation11 + $0x70] sm:$0xff]
    %v547 = vld [vmem:[#allocation11 + $0x78] sm:$0xff]
    %548 = vmatprep.subr.mxu0 0.0
    %549 = vmatpush1.msra.mxu0 %v532
    %550 = vmatprep.subr.mxu0 0.0
    %551 = vmatpush1.msra.mxu0 %v533
    %552 = vmatprep.subr.mxu0 0.0
    %553 = vmatpush1.msra.mxu0 %v534
    %554 = vmatprep.subr.mxu0 0.0
    %555 = vmatpush1.msra.mxu0 %v535
    %556 = vmatprep.subr.mxu0 0.0
    %557 = vmatpush1.msra.mxu0 %v536
    %558 = vmatprep.subr.mxu0 0.0
    %559 = vmatpush1.msra.mxu0 %v537
    %560 = vmatprep.subr.mxu0 0.0
    %561 = vmatpush1.msra.mxu0 %v538
    %562 = vmatprep.subr.mxu0 0.0
    %563 = vmatpush1.msra.mxu0 %v539
    %564 = vmatprep.subr.mxu0 0.0
    %565 = vmatpush1.msra.mxu0 %v540
    %566 = vmatprep.subr.mxu0 0.0
    %567 = vmatpush1.msra.mxu0 %v541
    %568 = vmatprep.subr.mxu0 0.0
    %569 = vmatpush1.msra.mxu0 %v542
    %570 = vmatprep.subr.mxu0 0.0
    %571 = vmatpush1.msra.mxu0 %v543
    %572 = vmatprep.subr.mxu0 0.0
    %573 = vmatpush1.msra.mxu0 %v544
    %574 = vmatprep.subr.mxu0 0.0
    %575 = vmatpush1.msra.mxu0 %v545
    %576 = vmatprep.subr.mxu0 0.0
    %577 = vmatpush1.msra.mxu0 %v546
    %578 = vmatprep.subr.mxu0 0.0
    %579 = vmatpush1.msra.mxu0 %v547
    %580 = vmatprep.subr.mxu0 0.0
    %581 = vmatpush1.msra.mxu0 0.0
    %582 = vmatprep.subr.mxu0 0.0
    %583 = vmatpush1.msra.mxu0 0.0
    %584 = vmatprep.subr.mxu0 0.0
    %585 = vmatpush1.msra.mxu0 0.0
    %586 = vmatprep.subr.mxu0 0.0
    %587 = vmatpush1.msra.mxu0 0.0
    %588 = vmatprep.subr.mxu0 0.0
    %589 = vmatpush1.msra.mxu0 0.0
    %590 = vmatprep.subr.mxu0 0.0
    %591 = vmatpush1.msra.mxu0 0.0
    %592 = vmatprep.subr.mxu0 0.0
    %593 = vmatpush1.msra.mxu0 0.0
    %594 = vmatprep.subr.mxu0 0.0
    %595 = vmatpush1.msra.mxu0 0.0
    %596 = vmatprep.subr.mxu0 0.0
    %597 = vmatpush1.msra.mxu0 0.0
    %598 = vmatprep.subr.mxu0 0.0
    %599 = vmatpush1.msra.mxu0 0.0
    %600 = vmatprep.subr.mxu0 0.0
    %601 = vmatpush1.msra.mxu0 0.0
    %602 = vmatprep.subr.mxu0 0.0
    %603 = vmatpush1.msra.mxu0 0.0
    %604 = vmatprep.subr.mxu0 0.0
    %605 = vmatpush1.msra.mxu0 0.0
    %606 = vmatprep.subr.mxu0 0.0
    %607 = vmatpush1.msra.mxu0 0.0
    %608 = vmatprep.subr.mxu0 0.0
    %609 = vmatpush1.msra.mxu0 0.0
    %610 = vmatprep.subr.mxu0 0.0
    %611 = vmatpush1.msra.mxu0 0.0
    %612 = vmatprep.mubr.f32.mxu0 0.0
    %613 = vmatmul.mubr.f32.gmra.mrb[0].mxu0 %v527
    %v614 = vpop.f32.mrb[0].mxu0
    %v615 = vadd.f32 0.0, %v614
    %v616 = vpop.f32.mrb[0].mxu0
    %617 = vdwg.mxu0
    %v618 = vadd.f32 %v531, %v615
    %s619 = scalar_lea.vmem [#allocation4], 32
    %620 = vst [vmem:[%s619] sm:$0xff] %v618
    %s621 = scalar_lea.vmem [#allocation2], 32
    %v622 = vld [vmem:[%s621] sm:$0xff]
    %v623 = vld [vmem:[#allocation11] sm:$0xff]
    %v624 = vld [vmem:[#allocation11 + $0x8] sm:$0xff]
    %v625 = vld [vmem:[#allocation11 + $0x10] sm:$0xff]
    %v626 = vld [vmem:[#allocation11 + $0x18] sm:$0xff]
    %v627 = vld [vmem:[#allocation11 + $0x20] sm:$0xff]
    %v628 = vld [vmem:[#allocation11 + $0x28] sm:$0xff]
    %v629 = vld [vmem:[#allocation11 + $0x30] sm:$0xff]
    %v630 = vld [vmem:[#allocation11 + $0x38] sm:$0xff]
    %v631 = vld [vmem:[#allocation11 + $0x40] sm:$0xff]
    %v632 = vld [vmem:[#allocation11 + $0x48] sm:$0xff]
    %v633 = vld [vmem:[#allocation11 + $0x50] sm:$0xff]
    %v634 = vld [vmem:[#allocation11 + $0x58] sm:$0xff]
    %v635 = vld [vmem:[#allocation11 + $0x60] sm:$0xff]
    %v636 = vld [vmem:[#allocation11 + $0x68] sm:$0xff]
    %v637 = vld [vmem:[#allocation11 + $0x70] sm:$0xff]
    %v638 = vld [vmem:[#allocation11 + $0x78] sm:$0xff]
    %639 = vmatprep.subr.mxu0 0.0
    %640 = vmatpush1.msra.mxu0 %v623
    %641 = vmatprep.subr.mxu0 0.0
    %642 = vmatpush1.msra.mxu0 %v624
    %643 = vmatprep.subr.mxu0 0.0
    %644 = vmatpush1.msra.mxu0 %v625
    %645 = vmatprep.subr.mxu0 0.0
    %646 = vmatpush1.msra.mxu0 %v626
    %647 = vmatprep.subr.mxu0 0.0
    %648 = vmatpush1.msra.mxu0 %v627
    %649 = vmatprep.subr.mxu0 0.0
    %650 = vmatpush1.msra.mxu0 %v628
    %651 = vmatprep.subr.mxu0 0.0
    %652 = vmatpush1.msra.mxu0 %v629
    %653 = vmatprep.subr.mxu0 0.0
    %654 = vmatpush1.msra.mxu0 %v630
    %655 = vmatprep.subr.mxu0 0.0
    %656 = vmatpush1.msra.mxu0 %v631
    %657 = vmatprep.subr.mxu0 0.0
    %658 = vmatpush1.msra.mxu0 %v632
    %659 = vmatprep.subr.mxu0 0.0
    %660 = vmatpush1.msra.mxu0 %v633
    %661 = vmatprep.subr.mxu0 0.0
    %662 = vmatpush1.msra.mxu0 %v634
    %663 = vmatprep.subr.mxu0 0.0
    %664 = vmatpush1.msra.mxu0 %v635
    %665 = vmatprep.subr.mxu0 0.0
    %666 = vmatpush1.msra.mxu0 %v636
    %667 = vmatprep.subr.mxu0 0.0
    %668 = vmatpush1.msra.mxu0 %v637
    %669 = vmatprep.subr.mxu0 0.0
    %670 = vmatpush1.msra.mxu0 %v638
    %671 = vmatprep.subr.mxu0 0.0
    %672 = vmatpush1.msra.mxu0 0.0
    %673 = vmatprep.subr.mxu0 0.0
    %674 = vmatpush1.msra.mxu0 0.0
    %675 = vmatprep.subr.mxu0 0.0
    %676 = vmatpush1.msra.mxu0 0.0
    %677 = vmatprep.subr.mxu0 0.0
    %678 = vmatpush1.msra.mxu0 0.0
    %679 = vmatprep.subr.mxu0 0.0
    %680 = vmatpush1.msra.mxu0 0.0
    %681 = vmatprep.subr.mxu0 0.0
    %682 = vmatpush1.msra.mxu0 0.0
    %683 = vmatprep.subr.mxu0 0.0
    %684 = vmatpush1.msra.mxu0 0.0
    %685 = vmatprep.subr.mxu0 0.0
    %686 = vmatpush1.msra.mxu0 0.0
    %687 = vmatprep.subr.mxu0 0.0
    %688 = vmatpush1.msra.mxu0 0.0
    %689 = vmatprep.subr.mxu0 0.0
    %690 = vmatpush1.msra.mxu0 0.0
    %691 = vmatprep.subr.mxu0 0.0
    %692 = vmatpush1.msra.mxu0 0.0
    %693 = vmatprep.subr.mxu0 0.0
    %694 = vmatpush1.msra.mxu0 0.0
    %695 = vmatprep.subr.mxu0 0.0
    %696 = vmatpush1.msra.mxu0 0.0
    %697 = vmatprep.subr.mxu0 0.0
    %698 = vmatpush1.msra.mxu0 0.0
    %699 = vmatprep.subr.mxu0 0.0
    %700 = vmatpush1.msra.mxu0 0.0
    %701 = vmatprep.subr.mxu0 0.0
    %702 = vmatpush1.msra.mxu0 0.0
    %703 = vmatprep.mubr.f32.mxu0 0.0
    %704 = vmatmul.mubr.f32.gmra.mrb[0].mxu0 %v618
    %v705 = vpop.f32.mrb[0].mxu0
    %v706 = vadd.f32 0.0, %v705
    %v707 = vpop.f32.mrb[0].mxu0
    %708 = vdwg.mxu0
    %v709 = vadd.f32 %v622, %v706
    %s710 = scalar_lea.vmem [#allocation4], 40
    %711 = vst [vmem:[%s710] sm:$0xff] %v709
    %s712 = scalar_lea.vmem [#allocation2], 40
    %v713 = vld [vmem:[%s712] sm:$0xff]
    %v714 = vld [vmem:[#allocation11] sm:$0xff]
    %v715 = vld [vmem:[#allocation11 + $0x8] sm:$0xff]
    %v716 = vld [vmem:[#allocation11 + $0x10] sm:$0xff]
    %v717 = vld [vmem:[#allocation11 + $0x18] sm:$0xff]
    %v718 = vld [vmem:[#allocation11 + $0x20] sm:$0xff]
    %v719 = vld [vmem:[#allocation11 + $0x28] sm:$0xff]
    %v720 = vld [vmem:[#allocation11 + $0x30] sm:$0xff]
    %v721 = vld [vmem:[#allocation11 + $0x38] sm:$0xff]
    %v722 = vld [vmem:[#allocation11 + $0x40] sm:$0xff]
    %v723 = vld [vmem:[#allocation11 + $0x48] sm:$0xff]
    %v724 = vld [vmem:[#allocation11 + $0x50] sm:$0xff]
    %v725 = vld [vmem:[#allocation11 + $0x58] sm:$0xff]
    %v726 = vld [vmem:[#allocation11 + $0x60] sm:$0xff]
    %v727 = vld [vmem:[#allocation11 + $0x68] sm:$0xff]
    %v728 = vld [vmem:[#allocation11 + $0x70] sm:$0xff]
    %v729 = vld [vmem:[#allocation11 + $0x78] sm:$0xff]
    %730 = vmatprep.subr.mxu0 0.0
    %731 = vmatpush1.msra.mxu0 %v714
    %732 = vmatprep.subr.mxu0 0.0
    %733 = vmatpush1.msra.mxu0 %v715
    %734 = vmatprep.subr.mxu0 0.0
    %735 = vmatpush1.msra.mxu0 %v716
    %736 = vmatprep.subr.mxu0 0.0
    %737 = vmatpush1.msra.mxu0 %v717
    %738 = vmatprep.subr.mxu0 0.0
    %739 = vmatpush1.msra.mxu0 %v718
    %740 = vmatprep.subr.mxu0 0.0
    %741 = vmatpush1.msra.mxu0 %v719
    %742 = vmatprep.subr.mxu0 0.0
    %743 = vmatpush1.msra.mxu0 %v720
    %744 = vmatprep.subr.mxu0 0.0
    %745 = vmatpush1.msra.mxu0 %v721
    %746 = vmatprep.subr.mxu0 0.0
    %747 = vmatpush1.msra.mxu0 %v722
    %748 = vmatprep.subr.mxu0 0.0
    %749 = vmatpush1.msra.mxu0 %v723
    %750 = vmatprep.subr.mxu0 0.0
    %751 = vmatpush1.msra.mxu0 %v724
    %752 = vmatprep.subr.mxu0 0.0
    %753 = vmatpush1.msra.mxu0 %v725
    %754 = vmatprep.subr.mxu0 0.0
    %755 = vmatpush1.msra.mxu0 %v726
    %756 = vmatprep.subr.mxu0 0.0
    %757 = vmatpush1.msra.mxu0 %v727
    %758 = vmatprep.subr.mxu0 0.0
    %759 = vmatpush1.msra.mxu0 %v728
    %760 = vmatprep.subr.mxu0 0.0
    %761 = vmatpush1.msra.mxu0 %v729
    %762 = vmatprep.subr.mxu0 0.0
    %763 = vmatpush1.msra.mxu0 0.0
    %764 = vmatprep.subr.mxu0 0.0
    %765 = vmatpush1.msra.mxu0 0.0
    %766 = vmatprep.subr.mxu0 0.0
    %767 = vmatpush1.msra.mxu0 0.0
    %768 = vmatprep.subr.mxu0 0.0
    %769 = vmatpush1.msra.mxu0 0.0
    %770 = vmatprep.subr.mxu0 0.0
    %771 = vmatpush1.msra.mxu0 0.0
    %772 = vmatprep.subr.mxu0 0.0
    %773 = vmatpush1.msra.mxu0 0.0
    %774 = vmatprep.subr.mxu0 0.0
    %775 = vmatpush1.msra.mxu0 0.0
    %776 = vmatprep.subr.mxu0 0.0
    %777 = vmatpush1.msra.mxu0 0.0
    %778 = vmatprep.subr.mxu0 0.0
    %779 = vmatpush1.msra.mxu0 0.0
    %780 = vmatprep.subr.mxu0 0.0
    %781 = vmatpush1.msra.mxu0 0.0
    %782 = vmatprep.subr.mxu0 0.0
    %783 = vmatpush1.msra.mxu0 0.0
    %784 = vmatprep.subr.mxu0 0.0
    %785 = vmatpush1.msra.mxu0 0.0
    %786 = vmatprep.subr.mxu0 0.0
    %787 = vmatpush1.msra.mxu0 0.0
    %788 = vmatprep.subr.mxu0 0.0
    %789 = vmatpush1.msra.mxu0 0.0
    %790 = vmatprep.subr.mxu0 0.0
    %791 = vmatpush1.msra.mxu0 0.0
    %792 = vmatprep.subr.mxu0 0.0
    %793 = vmatpush1.msra.mxu0 0.0
    %794 = vmatprep.mubr.f32.mxu0 0.0
    %795 = vmatmul.mubr.f32.gmra.mrb[0].mxu0 %v709
    %v796 = vpop.f32.mrb[0].mxu0
    %v797 = vadd.f32 0.0, %v796
    %v798 = vpop.f32.mrb[0].mxu0
    %799 = vdwg.mxu0
    %v800 = vadd.f32 %v713, %v797
    %801 = vst [vmem:[#allocation15] sm:$0xff] %v800
    %v802 = vld [vmem:[#allocation4] sm:$0xff]
    %v803 = vld [vmem:[#allocation4 + $0x8] sm:$0xff]
    %v804 = vld [vmem:[#allocation4 + $0x10] sm:$0xff]
    %v805 = vld [vmem:[#allocation4 + $0x18] sm:$0xff]
    %v806 = vld [vmem:[#allocation4 + $0x20] sm:$0xff]
    %v807 = vld [vmem:[#allocation4 + $0x28] sm:$0xff]
    %v808 = vld [vmem:[#allocation3] sm:$0xff]
    %v809 = vld [vmem:[#allocation3 + $0x8] sm:$0xff]
    %v810 = vld [vmem:[#allocation3 + $0x10] sm:$0xff]
    %v811 = vld [vmem:[#allocation3 + $0x18] sm:$0xff]
    %v812 = vld [vmem:[#allocation3 + $0x20] sm:$0xff]
    %v813 = vld [vmem:[#allocation3 + $0x28] sm:$0xff]
    %v814 = vld [vmem:[#allocation13] sm:$0xff]
    %v815 = vld [vmem:[#allocation13 + $0x8] sm:$0xff]
    %v816 = vld [vmem:[#allocation13 + $0x10] sm:$0xff]
    %v817 = vld [vmem:[#allocation13 + $0x18] sm:$0xff]
    %v818 = vld [vmem:[#allocation13 + $0x20] sm:$0xff]
    %v819 = vld [vmem:[#allocation13 + $0x28] sm:$0xff]
    %v820 = vld [vmem:[#allocation13 + $0x30] sm:$0xff]
    %v821 = vld [vmem:[#allocation13 + $0x38] sm:$0xff]
    %v822 = vld [vmem:[#allocation13 + $0x40] sm:$0xff]
    %v823 = vld [vmem:[#allocation13 + $0x48] sm:$0xff]
    %v824 = vld [vmem:[#allocation13 + $0x50] sm:$0xff]
    %v825 = vld [vmem:[#allocation13 + $0x58] sm:$0xff]
    %v826 = vld [vmem:[#allocation13 + $0x60] sm:$0xff]
    %v827 = vld [vmem:[#allocation13 + $0x68] sm:$0xff]
    %v828 = vld [vmem:[#allocation13 + $0x70] sm:$0xff]
    %v829 = vld [vmem:[#allocation13 + $0x78] sm:$0xff]
    %830 = vmatprep.subr.mxu0 0.0
    %831 = vmatpush1.msra.mxu0 %v814
    %832 = vmatprep.subr.mxu0 0.0
    %833 = vmatpush1.msra.mxu0 %v815
    %834 = vmatprep.subr.mxu0 0.0
    %835 = vmatpush1.msra.mxu0 %v816
    %836 = vmatprep.subr.mxu0 0.0
    %837 = vmatpush1.msra.mxu0 %v817
    %838 = vmatprep.subr.mxu0 0.0
    %839 = vmatpush1.msra.mxu0 %v818
    %840 = vmatprep.subr.mxu0 0.0
    %841 = vmatpush1.msra.mxu0 %v819
    %842 = vmatprep.subr.mxu0 0.0
    %843 = vmatpush1.msra.mxu0 %v820
    %844 = vmatprep.subr.mxu0 0.0
    %845 = vmatpush1.msra.mxu0 %v821
    %846 = vmatprep.subr.mxu0 0.0
    %847 = vmatpush1.msra.mxu0 %v822
    %848 = vmatprep.subr.mxu0 0.0
    %849 = vmatpush1.msra.mxu0 %v823
    %850 = vmatprep.subr.mxu0 0.0
    %851 = vmatpush1.msra.mxu0 %v824
    %852 = vmatprep.subr.mxu0 0.0
    %853 = vmatpush1.msra.mxu0 %v825
    %854 = vmatprep.subr.mxu0 0.0
    %855 = vmatpush1.msra.mxu0 %v826
    %856 = vmatprep.subr.mxu0 0.0
    %857 = vmatpush1.msra.mxu0 %v827
    %858 = vmatprep.subr.mxu0 0.0
    %859 = vmatpush1.msra.mxu0 %v828
    %860 = vmatprep.subr.mxu0 0.0
    %861 = vmatpush1.msra.mxu0 %v829
    %862 = vmatprep.subr.mxu0 0.0
    %863 = vmatpush1.msra.mxu0 0.0
    %864 = vmatprep.subr.mxu0 0.0
    %865 = vmatpush1.msra.mxu0 0.0
    %866 = vmatprep.subr.mxu0 0.0
    %867 = vmatpush1.msra.mxu0 0.0
    %868 = vmatprep.subr.mxu0 0.0
    %869 = vmatpush1.msra.mxu0 0.0
    %870 = vmatprep.subr.mxu0 0.0
    %871 = vmatpush1.msra.mxu0 0.0
    %872 = vmatprep.subr.mxu0 0.0
    %873 = vmatpush1.msra.mxu0 0.0
    %874 = vmatprep.subr.mxu0 0.0
    %875 = vmatpush1.msra.mxu0 0.0
    %876 = vmatprep.subr.mxu0 0.0
    %877 = vmatpush1.msra.mxu0 0.0
    %878 = vmatprep.subr.mxu0 0.0
    %879 = vmatpush1.msra.mxu0 0.0
    %880 = vmatprep.subr.mxu0 0.0
    %881 = vmatpush1.msra.mxu0 0.0
    %882 = vmatprep.subr.mxu0 0.0
    %883 = vmatpush1.msra.mxu0 0.0
    %884 = vmatprep.subr.mxu0 0.0
    %885 = vmatpush1.msra.mxu0 0.0
    %886 = vmatprep.subr.mxu0 0.0
    %887 = vmatpush1.msra.mxu0 0.0
    %888 = vmatprep.subr.mxu0 0.0
    %889 = vmatpush1.msra.mxu0 0.0
    %890 = vmatprep.subr.mxu0 0.0
    %891 = vmatpush1.msra.mxu0 0.0
    %892 = vmatprep.subr.mxu0 0.0
    %893 = vmatpush1.msra.mxu0 0.0
    %894 = vmatprep.mubr.f32.mxu0 0.0
    %895 = vmatmul.mubr.f32.gmra.mrb[0].mxu0 %v802
    %v896 = vpop.f32.mrb[0].mxu0
    %v897 = vadd.f32 0.0, %v896
    %v898 = vpop.f32.mrb[0].mxu0
    %899 = vmatprep.mubr.f32.mxu0 0.0
    %900 = vmatmul.mubr.f32.gmra.mrb[0].mxu0 %v803
    %v901 = vpop.f32.mrb[0].mxu0
    %v902 = vadd.f32 0.0, %v901
    %v903 = vpop.f32.mrb[0].mxu0
    %904 = vmatprep.mubr.f32.mxu0 0.0
    %905 = vmatmul.mubr.f32.gmra.mrb[0].mxu0 %v804
    %v906 = vpop.f32.mrb[0].mxu0
    %v907 = vadd.f32 0.0, %v906
    %v908 = vpop.f32.mrb[0].mxu0
    %909 = vmatprep.mubr.f32.mxu0 0.0
    %910 = vmatmul.mubr.f32.gmra.mrb[0].mxu0 %v805
    %v911 = vpop.f32.mrb[0].mxu0
    %v912 = vadd.f32 0.0, %v911
    %v913 = vpop.f32.mrb[0].mxu0
    %914 = vmatprep.mubr.f32.mxu0 0.0
    %915 = vmatmul.mubr.f32.gmra.mrb[0].mxu0 %v806
    %v916 = vpop.f32.mrb[0].mxu0
    %v917 = vadd.f32 0.0, %v916
    %v918 = vpop.f32.mrb[0].mxu0
    %919 = vmatprep.mubr.f32.mxu0 0.0
    %920 = vmatmul.mubr.f32.gmra.mrb[0].mxu0 %v807
    %v921 = vpop.f32.mrb[0].mxu0
    %v922 = vadd.f32 0.0, %v921
    %v923 = vpop.f32.mrb[0].mxu0
    %924 = vdwg.mxu0
    %v925 = vadd.f32 %v808, %v897
    %v926 = vadd.f32 %v809, %v902
    %v927 = vadd.f32 %v810, %v907
    %v928 = vadd.f32 %v811, %v912
    %v929 = vadd.f32 %v812, %v917
    %v930 = vadd.f32 %v813, %v922
    %931 = vmax.xlane.f32.xlu0 %v925
    %v932 = vpop.xlane.xlu0 %931
    %933 = vmax.xlane.f32.xlu0 %v926
    %v934 = vpop.xlane.xlu0 %933
    %935 = vmax.xlane.f32.xlu0 %v927
    %v936 = vpop.xlane.xlu0 %935
    %937 = vmax.xlane.f32.xlu0 %v928
    %v938 = vpop.xlane.xlu0 %937
    %939 = vmax.xlane.f32.xlu0 %v929
    %v940 = vpop.xlane.xlu0 %939
    %941 = vmax.xlane.f32.xlu0 %v930
    %v942 = vpop.xlane.xlu0 %941
    %v943 = vsub.f32 %v925, %v932
    %v944 = vsub.f32 %v926, %v934
    %v945 = vsub.f32 %v927, %v936
    %v946 = vsub.f32 %v928, %v938
    %v947 = vsub.f32 %v929, %v940
    %v948 = vsub.f32 %v930, %v942
    %v949 = vmul.f32 %v943, 1.442695
    %v950 = vpow.pop %v949
    %v951 = vmul.f32 %v944, 1.442695
    %v952 = vpow.pop %v951
    %v953 = vmul.f32 %v945, 1.442695
    %v954 = vpow.pop %v953
    %v955 = vmul.f32 %v946, 1.442695
    %v956 = vpow.pop %v955
    %v957 = vmul.f32 %v947, 1.442695
    %v958 = vpow.pop %v957
    %v959 = vmul.f32 %v948, 1.442695
    %v960 = vpow.pop %v959
    %961 = vadd.xlane.f32.xlu0 %v950
    %v962 = vpop.xlane.xlu0 %961
    %963 = vadd.xlane.f32.xlu0 %v952
    %v964 = vpop.xlane.xlu0 %963
    %965 = vadd.xlane.f32.xlu0 %v954
    %v966 = vpop.xlane.xlu0 %965
    %967 = vadd.xlane.f32.xlu0 %v956
    %v968 = vpop.xlane.xlu0 %967
    %969 = vadd.xlane.f32.xlu0 %v958
    %v970 = vpop.xlane.xlu0 %969
    %971 = vadd.xlane.f32.xlu0 %v960
    %v972 = vpop.xlane.xlu0 %971
    %v973 = vlog2.pop %v962
    %v974 = vmul.f32 %v973, 0.6931472
    %v975 = vlog2.pop %v964
    %v976 = vmul.f32 %v975, 0.6931472
    %v977 = vlog2.pop %v966
    %v978 = vmul.f32 %v977, 0.6931472
    %v979 = vlog2.pop %v968
    %v980 = vmul.f32 %v979, 0.6931472
    %v981 = vlog2.pop %v970
    %v982 = vmul.f32 %v981, 0.6931472
    %v983 = vlog2.pop %v972
    %v984 = vmul.f32 %v983, 0.6931472
    %v985 = vsub.f32 %v943, %v974
    %v986 = vsub.f32 %v944, %v976
    %v987 = vsub.f32 %v945, %v978
    %v988 = vsub.f32 %v946, %v980
    %v989 = vsub.f32 %v947, %v982
    %v990 = vsub.f32 %v948, %v984
    %991 = vst [vmem:[#allocation14] sm:$0xff] %v985
    %992 = vst [vmem:[#allocation14 + $0x8] sm:$0xff] %v986
    %993 = vst [vmem:[#allocation14 + $0x10] sm:$0xff] %v987
    %994 = vst [vmem:[#allocation14 + $0x18] sm:$0xff] %v988
    %995 = vst [vmem:[#allocation14 + $0x20] sm:$0xff] %v989
    %996 = vst [vmem:[#allocation14 + $0x28] sm:$0xff] %v990
    // Predicated region
    $region46: #{tpu_custom_call.1} parent=1 // pred_check
      _
    $region47: #{tpu_custom_call.1} parent=1 // pred_check_branch
      %998 = sbr.rel (0) target = $region49
    $region48: #{tpu_custom_call.1} parent=1 // pred_region
      %s1000 = ssub.s32 768, 768
      %1001 = vsyncadd [#allocation7], %s1000
      %s1002 = sshll.u32 [#allocation14], 4
      %s1003 = int_to_ptr.vmem [resolvable:$true] %s1002
      %1008 = dma.vmem_to_hbm [thread:$0]  %s1003, 768, %s6, [#allocation7], 128, 128, 8
    $region49: #{tpu_custom_call.1} parent=1 // pred_fallthru
      _
    // Predicated region
    $region50: #{tpu_custom_call.1} parent=1 // pred_check
      _
    $region51: #{tpu_custom_call.1} parent=1 // pred_check_branch
      %1010 = sbr.rel (0) target = $region53
    $region52: #{tpu_custom_call.1} parent=1 // pred_region
      %s1012 = ssub.s32 128, 128
      %1013 = vsyncadd [#allocation16], %s1012
      %s1015 = sshll.u32 [#allocation15], 4
      %s1016 = int_to_ptr.vmem [resolvable:$true] %s1015
      %1018 = dma.vmem_to_hbm [thread:$0]  %s1016, 128, %s7, [#allocation16]
    $region53: #{tpu_custom_call.1} parent=1 // pred_fallthru
      _
    // Predicated region
    $region54: #{tpu_custom_call.1} parent=1 // pred_check
      _
    $region55: #{tpu_custom_call.1} parent=1 // pred_check_branch
      %1020 = sbr.rel (0) target = $region57
    $region56: #{tpu_custom_call.1} parent=1 // pred_region
      %1021 = dma.done [#allocation7], 768
    $region57: #{tpu_custom_call.1} parent=1 // pred_fallthru
      _
    // Predicated region
    $region58: #{tpu_custom_call.1} parent=1 // pred_check
      _
    $region59: #{tpu_custom_call.1} parent=1 // pred_check_branch
      %1023 = sbr.rel (0) target = $region61
    $region60: #{tpu_custom_call.1} parent=1 // pred_region
      %1024 = dma.done [#allocation16], 128
    $region61: #{tpu_custom_call.1} parent=1 // pred_fallthru
      _
    %1025 = vsyncpa [#allocation6], 1
    %1026 = vsyncpa [#allocation9], 1
    %1027 = vsyncpa [#allocation12], 1
    %1028 = vsyncpa [#allocation7], 1
    %1029 = vsyncpa [#allocation16], 1

</llo_original>
